<compile_context>
chip_gen: v5e
topology: v5e:2x2
jax: 0.10.0
libtpu: 0.0.40
codegen_flags: <defaults>
</compile_context>

<pallas_src>
import functools
import math

import jax
import jax.numpy as jnp
from jax import lax
from jax.experimental import pallas as pl
from jax.experimental.pallas import tpu as pltpu

_MiB = 1024 * 1024


def _elu_plus_one(x):
    # elu(x, alpha=1) + 1 == x + 1 for x > 0 else exp(x)  (exp lands on the EUP)
    return jnp.where(x > 0, x + 1.0, jnp.exp(x))


# ---------------------------------------------------------------------------
# Phase 1: KV[b, h] = sum_l ((elu(K)+1)*mask)^T (V*mask),  scaled by 1/sqrt(L)
# ---------------------------------------------------------------------------
def _kv_accum_kernel(k_ref, v_ref, m_ref, kv_ref, acc_ref, *,
                     scale2, compute_dtype, assume_binary_mask):
    l = pl.program_id(2)
    nl = pl.num_programs(2)

    @pl.when(l == 0)
    def _():
        acc_ref[...] = jnp.zeros_like(acc_ref)

    k = k_ref[0].astype(jnp.float32)          # [Hb, TL, D]
    v = v_ref[0].astype(jnp.float32)          # [Hb, TL, D]
    m = m_ref[0]                              # [TL, 1] f32 (L on sublanes)

    k_feat = _elu_plus_one(k) * m
    # Only valid to skip V*mask when the mask is binary (padding mask).
    v_m = v if assume_binary_mask else v * m

    if compute_dtype is not None:
        k_feat = k_feat.astype(compute_dtype)
        v_m = v_m.astype(compute_dtype)

    # KV[h] += K'[h]^T @ V'[h]: contraction over TL (dim 1 of both operands),
    # batched over heads; no explicit transpose (MXU consumes LHS^T natively).
    acc_ref[...] += lax.dot_general(
        k_feat, v_m,
        dimension_numbers=(((1,), (1,)), ((0,), (0,))),
        preferred_element_type=jnp.float32)

    @pl.when(l == nl - 1)
    def _():
        # Fold both 1/L**0.25 scales (Q' and K') into KV once per (b, group).
        kv_ref[0] = acc_ref[...] * scale2


# ---------------------------------------------------------------------------
# Phase 2: X[b, h, l, :] = (elu(Q)+1)[b, h, l, :] @ KV[b, h]
# ---------------------------------------------------------------------------
def _q_kv_kernel(q_ref, kv_ref, o_ref, *, compute_dtype):
    q = q_ref[0].astype(jnp.float32)          # [Hb, TL, D]
    kv = kv_ref[0]                            # [Hb, D, D] f32

    q_feat = _elu_plus_one(q)
    if compute_dtype is not None:
        q_feat = q_feat.astype(compute_dtype)
        kv = kv.astype(compute_dtype)

    out = lax.dot_general(
        q_feat, kv,
        dimension_numbers=(((2,), (1,)), ((0,), (0,))),
        preferred_element_type=jnp.float32)
    o_ref[0] = out.astype(o_ref.dtype)


# ---------------------------------------------------------------------------
# Tiling / VMEM budgeting helpers
# ---------------------------------------------------------------------------
def _vmem_capacity_bytes():
    try:
        info = pltpu.get_tpu_info()
        cap = getattr(info, "vmem_capacity_bytes", None)
        if cap:
            return int(cap)
    except Exception:
        pass
    return 64 * _MiB   # conservative default: v7x per-TC VMEM


def _divisors(n):
    return [d for d in range(1, n + 1) if n % d == 0]


def _working_set_bytes(hb, tl, D, in_its, out_its):
    blk = hb * tl * D
    kvb = hb * D * D * 4
    mask_blk = tl * 128 * 4                    # (TL, 1) block lane-pads to 128
    # Phase 1: double-buffered K, V, mask inputs + KV output (x2) + acc scratch
    #          + ~3 block-sized f32 temporaries (k_feat, v_m, upcast copies).
    p1 = 2 * (2 * blk * in_its + mask_blk) + 2 * kvb + kvb + 3 * blk * 4
    # Phase 2: double-buffered Q input, KV input, output + ~2 f32 temporaries.
    p2 = 2 * (blk * in_its + kvb + blk * out_its) + 2 * blk * 4
    return max(p1, p2)


def _pick_tiling(B, H, L, D, in_its, out_its, io_budget_bytes, max_hb):
    hb_cands = [d for d in _divisors(H) if d <= max_hb] or [1]
    # TL must be a multiple of 8 (sublane tile) or equal to L (full dim).
    tl_cands = sorted({d for d in _divisors(L) if d % 8 == 0} | {L})

    best = (min(hb_cands), min(tl_cands))
    best_score = -1
    for hb in hb_cands:
        for tl in tl_cands:
            if _working_set_bytes(hb, tl, D, in_its, out_its) > io_budget_bytes:
                continue
            score = hb * tl
            if score > best_score or (score == best_score and tl > best[1]):
                best, best_score = (hb, tl), score
    hb, tl = best

    # v7x has 2 TensorCores; make sure the grid has >= 2 steps so both get work.
    def steps(hb_, tl_):
        return B * (H // hb_) * (L // tl_)
    while steps(hb, tl) < 2:
        smaller_hb = [d for d in hb_cands if d < hb]
        smaller_tl = [t for t in tl_cands if t < tl]
        if smaller_hb:
            hb = max(smaller_hb)
        elif smaller_tl:
            tl = max(smaller_tl)
        else:
            break
    return hb, tl


# ---------------------------------------------------------------------------
# Public wrapper
# ---------------------------------------------------------------------------
def linear_attention(Q, K, V, mask, *, use_bf16_matmul=False,
                     assume_binary_mask=False):
    """Pallas TPU implementation of LinearAttention.forward.

    Q, K, V: [B, H, L, D] float32 (or bf16); mask: [B, L] float.
    returns: [B, H, L, D] with Q's original dtype.

    use_bf16_matmul: cast Q/K/V to bf16 at the HBM boundary (halves input DMA
      traffic; f32 accumulation on the MXU). Off by default for exact f32 match.
    assume_binary_mask: skip the V*mask multiply (valid only for masks in {0,1}).
    """
    B, H, L, D = Q.shape
    out_dtype = Q.dtype
    scale2 = 1.0 / math.sqrt(float(L))         # (1/L**0.25)^2 folded into KV

    compute_dtype = jnp.bfloat16 if use_bf16_matmul else None
    if use_bf16_matmul:
        # Cast at the HBM boundary so the DMA traffic actually halves.
        Q = Q.astype(jnp.bfloat16)
        K = K.astype(jnp.bfloat16)
        V = V.astype(jnp.bfloat16)

    in_its = jnp.dtype(Q.dtype).itemsize
    out_its = jnp.dtype(out_dtype).itemsize

    cap = _vmem_capacity_bytes()
    if cap >= 128 * _MiB:          # v5e / v6e: plenty of VMEM, go wide
        io_budget, vmem_cap, max_hb = 32 * _MiB, 96 * _MiB, 16
    else:                          # v7x: 64 MiB per TC, stay conservative
        io_budget, vmem_cap, max_hb = 14 * _MiB, 40 * _MiB, 8

    Hb, TL = _pick_tiling(B, H, L, D, in_its, out_its, io_budget, max_hb)
    n_l = L // TL

    ws = _working_set_bytes(Hb, TL, D, in_its, out_its)
    vmem_limit = int(min(vmem_cap, max(32 * _MiB, 2 * ws)))

    # Mask as [B, L, 1]: L on sublanes -> free lane broadcast against [*, TL, D].
    mask3 = mask.reshape(B, L, 1).astype(jnp.float32)

    # ------------------- Phase 1: KV accumulation over L tiles ---------------
    kv_kernel = functools.partial(
        _kv_accum_kernel, scale2=scale2, compute_dtype=compute_dtype,
        assume_binary_mask=assume_binary_mask)

    kv_cost = pl.CostEstimate(
        flops=2 * B * H * L * D * D,
        transcendentals=B * H * L * D,
        bytes_accessed=2 * B * H * L * D * in_its + B * L * 4
        + B * H * D * D * 4)

    kv = pl.pallas_call(
        kv_kernel,
        out_shape=jax.ShapeDtypeStruct((B, H, D, D), jnp.float32),
        grid_spec=pltpu.PrefetchScalarGridSpec(
            num_scalar_prefetch=0,
            grid=(B, H // Hb, n_l),
            in_specs=[
                pl.BlockSpec((1, Hb, TL, D), lambda b, g, l: (b, g, l, 0)),
                pl.BlockSpec((1, Hb, TL, D), lambda b, g, l: (b, g, l, 0)),
                pl.BlockSpec((1, TL, 1), lambda b, g, l: (b, l, 0)),
            ],
            out_specs=pl.BlockSpec((1, Hb, D, D), lambda b, g, l: (b, g, 0, 0)),
            scratch_shapes=[pltpu.VMEM((Hb, D, D), jnp.float32)],
        ),
        compiler_params=pltpu.CompilerParams(
            dimension_semantics=("parallel", "parallel", "arbitrary"),
            vmem_limit_bytes=vmem_limit),
        cost_estimate=kv_cost,
    )(K, V, mask3)

    # ------------------- Phase 2: X = Q' @ KV, streamed over L tiles ---------
    q_kernel = functools.partial(_q_kv_kernel, compute_dtype=compute_dtype)

    q_cost = pl.CostEstimate(
        flops=2 * B * H * L * D * D,
        transcendentals=B * H * L * D,
        bytes_accessed=B * H * L * D * in_its + B * H * D * D * 4 * n_l
        + B * H * L * D * out_its)

    out = pl.pallas_call(
        q_kernel,
        out_shape=jax.ShapeDtypeStruct((B, H, L, D), out_dtype),
        grid_spec=pltpu.PrefetchScalarGridSpec(
            num_scalar_prefetch=0,
            grid=(B, H // Hb, n_l),
            in_specs=[
                pl.BlockSpec((1, Hb, TL, D), lambda b, g, l: (b, g, l, 0)),
                pl.BlockSpec((1, Hb, D, D), lambda b, g, l: (b, g, 0, 0)),
            ],
            out_specs=pl.BlockSpec((1, Hb, TL, D), lambda b, g, l: (b, g, l, 0)),
        ),
        compiler_params=pltpu.CompilerParams(
            dimension_semantics=("parallel", "parallel", "parallel"),
            vmem_limit_bytes=vmem_limit),
        cost_estimate=q_cost,
    )(Q, kv)

    return out


def _reference(Q, K, V, mask):
    """Pure-JAX reference mirroring the PyTorch module."""
    L = Q.shape[2]
    s = 1.0 / math.sqrt(math.sqrt(float(L)))
    Qp = (jax.nn.elu(Q) + 1.0) * s
    Kp = (jax.nn.elu(K) + 1.0) * mask[:, None, :, None] * s
    Vm = V * mask[:, None, :, None]
    return jnp.matmul(Qp, jnp.matmul(jnp.swapaxes(Kp, -2, -1), Vm))


if __name__ == "__main__":
    # Small, deterministic example shapes.
    B, H, L, D = 2, 4, 16, 32
    key = jax.random.PRNGKey(0)
    kq, kk, kv_, km = jax.random.split(key, 4)

    Q = jax.random.normal(kq, (B, H, L, D), dtype=jnp.float32)
    K = jax.random.normal(kk, (B, H, L, D), dtype=jnp.float32)
    V = jax.random.normal(kv_, (B, H, L, D), dtype=jnp.float32)
    mask = (jax.random.uniform(km, (B, L)) > 0.3).astype(jnp.float32)

    out = jax.block_until_ready(linear_attention(Q, K, V, mask))

    ref = _reference(Q, K, V, mask)
    assert out.shape == (B, H, L, D)
    assert jnp.allclose(out, ref, atol=1e-4, rtol=1e-4), "mismatch vs reference"

    print("KERNEL_OK")
</pallas_src>

<mosaic_0001>
module attributes {stable_mosaic.version = 11 : i64} {
  func.func @_kv_accum_kernel(%arg0: i32, %arg1: i32, %arg2: i32, %arg3: memref<1x4x16x32xf32, #tpu.memory_space<vmem>>, %arg4: memref<1x4x16x32xf32, #tpu.memory_space<vmem>>, %arg5: memref<1x16x1xf32, #tpu.memory_space<vmem>>, %arg6: memref<1x4x32x32xf32, #tpu.memory_space<vmem>>, %arg7: memref<4x32x32xf32, #tpu.memory_space<vmem>>) attributes {dimension_semantics = [#tpu.dimension_semantics<parallel>, #tpu.dimension_semantics<parallel>, #tpu.dimension_semantics<arbitrary>], iteration_bounds = array<i64: 2, 1, 1>, scalar_prefetch = 0 : i64, scratch_operands = 1 : i64, tpu.core_type = #tpu.core_type<tc>, window_params = [{transform_indices = @transform_0, window_bounds = array<i64: 1, 4, 16, 32>}, {transform_indices = @transform_1, window_bounds = array<i64: 1, 4, 16, 32>}, {transform_indices = @transform_2, window_bounds = array<i64: 1, 16, 1>}, {transform_indices = @transform_3, window_bounds = array<i64: 1, 4, 32, 32>}]} {
    %c0_i32 = arith.constant 0 : i32
    %0 = arith.cmpi eq, %arg2, %c0_i32 : i32
    %1 = arith.extui %0 : i1 to i32
    %c0_i32_0 = arith.constant 0 : i32
    %2 = arith.cmpi ne, %1, %c0_i32_0 : i32
    scf.if %2 {
      %cst_21 = arith.constant 0.000000e+00 : f32
      %28 = vector.broadcast %cst_21 : f32 to vector<4x32x32xf32>
      %c0_22 = arith.constant 0 : index
      %c0_23 = arith.constant 0 : index
      %c0_24 = arith.constant 0 : index
      %29 = vector.load %arg7[%c0_22, %c0_23, %c0_24] : memref<4x32x32xf32, #tpu.memory_space<vmem>>, vector<4x32x32xf32>
      tpu.vector_store %arg7[%c0_22, %c0_23, %c0_24], %28 {strides = array<i32>} : memref<4x32x32xf32, #tpu.memory_space<vmem>>, vector<4x32x32xf32>,
    } else {
    }
    %c0 = arith.constant 0 : index
    %c0_1 = arith.constant 0 : index
    %c0_2 = arith.constant 0 : index
    %c0_3 = arith.constant 0 : index
    %3 = vector.load %arg3[%c0, %c0_1, %c0_2, %c0_3] : memref<1x4x16x32xf32, #tpu.memory_space<vmem>>, vector<1x4x16x32xf32>
    %4 = vector.shape_cast %3 : vector<1x4x16x32xf32> to vector<4x16x32xf32>
    %c0_4 = arith.constant 0 : index
    %c0_5 = arith.constant 0 : index
    %c0_6 = arith.constant 0 : index
    %c0_7 = arith.constant 0 : index
    %5 = vector.load %arg4[%c0_4, %c0_5, %c0_6, %c0_7] : memref<1x4x16x32xf32, #tpu.memory_space<vmem>>, vector<1x4x16x32xf32>
    %6 = vector.shape_cast %5 : vector<1x4x16x32xf32> to vector<4x16x32xf32>
    %c0_8 = arith.constant 0 : index
    %c0_9 = arith.constant 0 : index
    %c0_10 = arith.constant 0 : index
    %7 = vector.load %arg5[%c0_8, %c0_9, %c0_10] : memref<1x16x1xf32, #tpu.memory_space<vmem>>, vector<1x16x1xf32>
    %8 = vector.shape_cast %7 : vector<1x16x1xf32> to vector<16x1xf32>
    %cst = arith.constant 0.000000e+00 : f32
    %9 = vector.broadcast %cst : f32 to vector<4x16x32xf32>
    %10 = arith.cmpf ogt, %4, %9 : vector<4x16x32xf32>
    %cst_11 = arith.constant 1.000000e+00 : f32
    %11 = vector.broadcast %cst_11 : f32 to vector<4x16x32xf32>
    %12 = arith.addf %4, %11 : vector<4x16x32xf32>
    %13 = math.exp %4 : vector<4x16x32xf32>
    %14 = arith.select %10, %12, %13 : vector<4x16x32xi1>, vector<4x16x32xf32>
    %15 = vector.shape_cast %8 : vector<16x1xf32> to vector<1x16x1xf32>
    %16 = vector.broadcast %15 : vector<1x16x1xf32> to vector<4x16x32xf32>
    %17 = arith.mulf %14, %16 : vector<4x16x32xf32>
    %18 = vector.shape_cast %8 : vector<16x1xf32> to vector<1x16x1xf32>
    %19 = vector.broadcast %18 : vector<1x16x1xf32> to vector<4x16x32xf32>
    %20 = arith.mulf %6, %19 : vector<4x16x32xf32>
    %c0_12 = arith.constant 0 : index
    %c0_13 = arith.constant 0 : index
    %c0_14 = arith.constant 0 : index
    %21 = vector.load %arg7[%c0_12, %c0_13, %c0_14] : memref<4x32x32xf32, #tpu.memory_space<vmem>>, vector<4x32x32xf32>
    %cst_15 = arith.constant dense<0.000000e+00> : vector<4x32x32xf32>
    %22 = tpu.matmul %17, %20, %cst_15 {dimension_numbers = #tpu.dot_dimension_numbers<[1], [1], [2], [2], [0, 0, 0, 2, 1, 2], [0], [0]>} : vector<4x16x32xf32>, vector<4x16x32xf32>, vector<4x32x32xf32> -> vector<4x32x32xf32>
    %23 = arith.addf %21, %22 : vector<4x32x32xf32>
    %c0_16 = arith.constant 0 : index
    %c0_17 = arith.constant 0 : index
    %c0_18 = arith.constant 0 : index
    %24 = vector.load %arg7[%c0_16, %c0_17, %c0_18] : memref<4x32x32xf32, #tpu.memory_space<vmem>>, vector<4x32x32xf32>
    tpu.vector_store %arg7[%c0_16, %c0_17, %c0_18], %23 {strides = array<i32>} : memref<4x32x32xf32, #tpu.memory_space<vmem>>, vector<4x32x32xf32>,
    %c0_i32_19 = arith.constant 0 : i32
    %25 = arith.cmpi eq, %arg2, %c0_i32_19 : i32
    %26 = arith.extui %25 : i1 to i32
    %c0_i32_20 = arith.constant 0 : i32
    %27 = arith.cmpi ne, %26, %c0_i32_20 : i32
    scf.if %27 {
      %c0_21 = arith.constant 0 : index
      %c0_22 = arith.constant 0 : index
      %c0_23 = arith.constant 0 : index
      %28 = vector.load %arg7[%c0_21, %c0_22, %c0_23] : memref<4x32x32xf32, #tpu.memory_space<vmem>>, vector<4x32x32xf32>
      %cst_24 = arith.constant 2.500000e-01 : f32
      %29 = vector.broadcast %cst_24 : f32 to vector<4x32x32xf32>
      %30 = arith.mulf %28, %29 : vector<4x32x32xf32>
      %c0_25 = arith.constant 0 : index
      %c0_26 = arith.constant 0 : index
      %c0_27 = arith.constant 0 : index
      %c0_28 = arith.constant 0 : index
      %31 = vector.load %arg6[%c0_25, %c0_26, %c0_27, %c0_28] : memref<1x4x32x32xf32, #tpu.memory_space<vmem>>, vector<1x4x32x32xf32>
      %32 = vector.shape_cast %31 : vector<1x4x32x32xf32> to vector<4x32x32xf32>
      %33 = vector.shape_cast %30 : vector<4x32x32xf32> to vector<1x4x32x32xf32>
      tpu.vector_store %arg6[%c0_25, %c0_26, %c0_27, %c0_28], %33 {strides = array<i32>} : memref<1x4x32x32xf32, #tpu.memory_space<vmem>>, vector<1x4x32x32xf32>,
    } else {
    }
    return
  }
  func.func @transform_0(%arg0: i32, %arg1: i32, %arg2: i32) -> (i32, i32, i32, i32) {
    %c0_i32 = arith.constant 0 : i32
    %c0_i32_0 = arith.constant 0 : i32
    return %arg0, %arg1, %arg2, %c0_i32 : i32, i32, i32, i32
  }
  func.func @transform_1(%arg0: i32, %arg1: i32, %arg2: i32) -> (i32, i32, i32, i32) {
    %c0_i32 = arith.constant 0 : i32
    %c0_i32_0 = arith.constant 0 : i32
    return %arg0, %arg1, %arg2, %c0_i32 : i32, i32, i32, i32
  }
  func.func @transform_2(%arg0: i32, %arg1: i32, %arg2: i32) -> (i32, i32, i32) {
    %c0_i32 = arith.constant 0 : i32
    %c0_i32_0 = arith.constant 0 : i32
    return %arg0, %arg2, %c0_i32 : i32, i32, i32
  }
  func.func @transform_3(%arg0: i32, %arg1: i32, %arg2: i32) -> (i32, i32, i32, i32) {
    %c0_i32 = arith.constant 0 : i32
    %c0_i32_0 = arith.constant 0 : i32
    %c0_i32_1 = arith.constant 0 : i32
    return %arg0, %arg1, %c0_i32, %c0_i32_0 : i32, i32, i32, i32
  }
}

</mosaic_0001>

<llo_original>
// kernel: tpu_custom_call.1
$region0: #{tpu_custom_call.1}
  #allocation0 [shape = 'u32[]', space=smem, size = 0x4, offset = 0x4, fixed_abs, tag = 'smem constant byte address 0x4 - core index']
  #allocation1 [shape = 'u32[72,128]{1,0:T(1,128)}', space=vmem, size = 0x9000, scoped, tag = 'internal scratch']
  #allocation2 [shape = 'f32[4,32,32]{2,1,0:T(8,128)}', space=vmem, size = 0x10000, scoped, tag = 'scratch operand']
  %s0 = inlined_call_operand.hbm [shape: f32[2,4,16,32], index: 0, kind: input, shape index: {}]
  %s1 = inlined_call_operand.hbm [shape: f32[2,4,16,32], index: 1, kind: input, shape index: {}]
  %s2 = inlined_call_operand.vmem [shape: f32[2,16,1], index: 2, kind: input, shape index: {}]
  %s3 = inlined_call_operand.hbm [shape: f32[2,4,32,32], index: 3, kind: output, shape index: {}]
  %s4 = sld [smem:[#allocation0]]
  $region61: #{tpu_custom_call.1} parent=0
    _
  %s6 = ssub.s32 1, %s4
  %s7 = scalar_select 0, %s6, %s4
  $region1: #{tpu_custom_call.1} parent=0
    #allocation3 [shape = 'u8[65536]{0}', space=vmem, size = 0x10000, scoped, tag = 'input window, operand 0']
    #allocation4 [shape = 's32[2]{0}', space=sflag, size = 0x8, scoped, tag = 'scoped memory for tpu_custom_call.1']
    #allocation5 [shape = 's32[2]{0}', space=sflag, size = 0x8, scoped, tag = 'scoped memory for tpu_custom_call.1']
    #allocation6 [shape = 'u8[65536]{0}', space=vmem, size = 0x10000, scoped, tag = 'input window, operand 1']
    #allocation7 [shape = 's32[2]{0}', space=sflag, size = 0x8, scoped, tag = 'scoped memory for tpu_custom_call.1']
    #allocation8 [shape = 'u8[131072]{0}', space=vmem, size = 0x20000, scoped, tag = 'output window, operand 0']
    %8 = vsyncpa [#allocation4], 0
    %s9 = scalar_lea.sflag [#allocation4], 1
    %10 = vsyncpa %s9, 0
    %11 = vsyncpa [#allocation7], 0
    %s12 = scalar_lea.sflag [#allocation7], 1
    %13 = vsyncpa %s12, 0
    %14 = vsyncpa [#allocation5], 0
    %s15 = scalar_lea.sflag [#allocation5], 1
    %16 = vsyncpa %s15, 0
    loop: start=0, step=1, limit=4
    $region2: #{tpu_custom_call.1} parent=1 // loop_pre_header
      _
    $region3: #{tpu_custom_call.1} parent=1 // loop_header
      %s18 = sphi 0, %s22
      %p19 = scmp.ge.s32.totalorder %s18, 4
      %s25 = sphi 0, %s44
      %s26 = sphi 0, %s40
      %s27 = sphi 0, %s36
      %s28 = sphi 0, %s25
      %s29 = sphi 0, %s26
      %s30 = sphi 0, %s27
      %s31 = sphi 0, %s28
      %s32 = sphi 0, %s29
      %s33 = sphi 0, %s30
      %s51 = sphi 0, %s53
      %s54 = sphi 0, %s51
      %s55 = sphi 0, %s54
      %s71 = sphi 0, %s55
      %s81 = sphi 0, %s83
      %s84 = sphi 0, %s81
      %s85 = sphi 0, %s84
      %s101 = sphi 0, %s85
      %s109 = sphi 0, %s111
      %s112 = sphi 0, %s109
      %s113 = sphi 0, %s112
      %s129 = sphi 0, %s113
      %s137 = sphi 0, %s139
      %s140 = sphi 0, %s137
      %s141 = sphi 0, %s140
      %s157 = sphi 0, %s141
    $region4: #{tpu_custom_call.1} parent=1 // loop_header_branch
      %21 = sbr.rel (%p19) target = $region8
    $region5: #{tpu_custom_call.1} parent=1 // loop_body
      %s23 = ssub.s32 %s18, 1
      %s24 = ssub.s32 %s18, 2
      %s34 = sadd.s32 1, %s27
      %p35 = scmp.ge.s32.totalorder %s34, 1
      %s36 = scalar_select %p35, 0, %s34
      %s37 = sadd.s32 1, %s26
      %s38 = scalar_select %p35, %s37, %s26
      %p39 = scmp.ge.s32.totalorder %s38, 1
      %s40 = scalar_select %p39, 0, %s38
      %s41 = sadd.s32 1, %s25
      %s42 = scalar_select %p39, %s41, %s25
      %p43 = scmp.ge.s32.totalorder %s42, 2
      %s44 = scalar_select %p43, 0, %s42
      %s45 = ssub.s32 %s25, %s44
      %s46 = ssub.s32 %s26, %s40
      %s47 = sor.u32 %s45, %s46
      %s48 = ssub.s32 %s27, %s36
      %s49 = sor.u32 %s47, %s48
      %p50 = scmp.eq.s32.totalorder %s49, 0
      %s52 = sadd.s32 %s51, 1
      %s53 = scalar_select %p50, %s51, %s52
      %p56 = pneg %p50
      %p57 = scmp.eq.s32.totalorder %s18, 1
      %p58 = por %p56, %p57
      %p59 = scmp.ne.s32.totalorder %s51, %s54
      %p60 = scmp.eq.s32.totalorder %s18, 0
      %p61 = por %p59, %p60
      %p62 = scmp.ne.s32.totalorder %s51, %s54
      %p63 = scmp.eq.s32.totalorder %s23, 1
      %p64 = por %p62, %p63
      %p65 = scmp.ne.s32.totalorder %s54, %s55
      %p66 = scmp.eq.s32.totalorder %s23, 0
      %p67 = por %p65, %p66
      %p68 = scmp.ne.s32.totalorder %s54, %s55
      %p69 = scmp.eq.s32.totalorder %s24, 1
      %p70 = por %p68, %p69
      %p72 = scmp.ne.s32.totalorder %s55, %s71
      %p73 = scmp.eq.s32.totalorder %s24, 0
      %p74 = por %p72, %p73
      %s75 = ssub.s32 %s25, %s44
      %s76 = ssub.s32 %s26, %s40
      %s77 = sor.u32 %s75, %s76
      %s78 = ssub.s32 %s27, %s36
      %s79 = sor.u32 %s77, %s78
      %p80 = scmp.eq.s32.totalorder %s79, 0
      %s82 = sadd.s32 %s81, 1
      %s83 = scalar_select %p80, %s81, %s82
      %p86 = pneg %p80
      %p87 = scmp.eq.s32.totalorder %s18, 1
      %p88 = por %p86, %p87
      %p89 = scmp.ne.s32.totalorder %s81, %s84
      %p90 = scmp.eq.s32.totalorder %s18, 0
      %p91 = por %p89, %p90
      %p92 = scmp.ne.s32.totalorder %s81, %s84
      %p93 = scmp.eq.s32.totalorder %s23, 1
      %p94 = por %p92, %p93
      %p95 = scmp.ne.s32.totalorder %s84, %s85
      %p96 = scmp.eq.s32.totalorder %s23, 0
      %p97 = por %p95, %p96
      %p98 = scmp.ne.s32.totalorder %s84, %s85
      %p99 = scmp.eq.s32.totalorder %s24, 1
      %p100 = por %p98, %p99
      %p102 = scmp.ne.s32.totalorder %s85, %s101
      %p103 = scmp.eq.s32.totalorder %s24, 0
      %p104 = por %p102, %p103
      %s105 = ssub.s32 %s25, %s44
      %s106 = ssub.s32 %s27, %s36
      %s107 = sor.u32 %s105, %s106
      %p108 = scmp.eq.s32.totalorder %s107, 0
      %s110 = sadd.s32 %s109, 1
      %s111 = scalar_select %p108, %s109, %s110
      %p114 = pneg %p108
      %p115 = scmp.eq.s32.totalorder %s18, 1
      %p116 = por %p114, %p115
      %p117 = scmp.ne.s32.totalorder %s109, %s112
      %p118 = scmp.eq.s32.totalorder %s18, 0
      %p119 = por %p117, %p118
      %p120 = scmp.ne.s32.totalorder %s109, %s112
      %p121 = scmp.eq.s32.totalorder %s23, 1
      %p122 = por %p120, %p121
      %p123 = scmp.ne.s32.totalorder %s112, %s113
      %p124 = scmp.eq.s32.totalorder %s23, 0
      %p125 = por %p123, %p124
      %p126 = scmp.ne.s32.totalorder %s112, %s113
      %p127 = scmp.eq.s32.totalorder %s24, 1
      %p128 = por %p126, %p127
      %p130 = scmp.ne.s32.totalorder %s113, %s129
      %p131 = scmp.eq.s32.totalorder %s24, 0
      %p132 = por %p130, %p131
      %s133 = ssub.s32 %s25, %s44
      %s134 = ssub.s32 %s26, %s40
      %s135 = sor.u32 %s133, %s134
      %p136 = scmp.eq.s32.totalorder %s135, 0
      %s138 = sadd.s32 %s137, 1
      %s139 = scalar_select %p136, %s137, %s138
      %p142 = pneg %p136
      %p143 = scmp.eq.s32.totalorder %s18, 1
      %p144 = por %p142, %p143
      %p145 = scmp.ne.s32.totalorder %s137, %s140
      %p146 = scmp.eq.s32.totalorder %s18, 0
      %p147 = por %p145, %p146
      %p148 = scmp.ne.s32.totalorder %s137, %s140
      %p149 = scmp.eq.s32.totalorder %s23, 1
      %p150 = por %p148, %p149
      %p151 = scmp.ne.s32.totalorder %s140, %s141
      %p152 = scmp.eq.s32.totalorder %s23, 0
      %p153 = por %p151, %p152
      %p154 = scmp.ne.s32.totalorder %s140, %s141
      %p155 = scmp.eq.s32.totalorder %s24, 1
      %p156 = por %p154, %p155
      %p158 = scmp.ne.s32.totalorder %s141, %s157
      %p159 = scmp.eq.s32.totalorder %s24, 0
      %p160 = por %p158, %p159
      %p161 = scmp.le.s32.totalorder 1, %s18
      %p162 = scmp.lt.s32.totalorder %s18, 3
      %p163 = pnand %p161, %p162
      %p164 = pneg %p163
      // Predicated region
      $region9: #{tpu_custom_call.1} parent=5 // pred_check
        _
      $region10: #{tpu_custom_call.1} parent=5 // pred_check_branch
        %166 = sbr.rel (%p163) target = $region12
      $region11: #{tpu_custom_call.1} parent=5 // pred_region
        %s167 = ssub.s32 %s18, 1
      $region12: #{tpu_custom_call.1} parent=5 // pred_fallthru
        _
      %p168 = scmp.lt.s32.totalorder %s18, 2
      // Predicated region
      $region13: #{tpu_custom_call.1} parent=5 // pred_check
        %p169 = pneg %p168
      $region14: #{tpu_custom_call.1} parent=5 // pred_check_branch
        %171 = sbr.rel (%p169) target = $region16
      $region15: #{tpu_custom_call.1} parent=5 // pred_region
        // Predicated region
        $region17: #{tpu_custom_call.1} parent=15 // pred_check
          %p172 = pneg %p61
        $region18: #{tpu_custom_call.1} parent=15 // pred_check_branch
          %174 = sbr.rel (%p172) target = $region20
        $region19: #{tpu_custom_call.1} parent=15 // pred_region
          %s175 = sand.u32 %s51, 1
          %s176 = scalar_lea.sflag [#allocation4], %s175
          %s177 = sand.u32 %s51, 1
          %s178 = smul.addr %s177, 64
          %s179 = scalar_lea.vmem [#allocation3], %s178
          %s180 = smul.u32 4, %s26
          %s181 = smul.u32 2, %s27
          %183 = vsyncadd %s176, 0
          %s184 = smul.addr %s180, 2
          %s185 = sadd.s32 %s181, %s184
          %s186 = smul.addr %s25, 8
          %s187 = sadd.s32 %s185, %s186
          %s188 = smul.addr %s187, 8
          %s189 = scalar_lea.hbm %s0, %s188
          %s190 = sshll.u32 %s189, 4
          %s191 = int_to_ptr.hbm [resolvable:$true] %s190
          %s192 = sshll.u32 %s179, 4
          %s193 = int_to_ptr.vmem [resolvable:$true] %s192
          %198 = dma.hbm_to_vmem [thread:$0]  %s191, 1024, %s193, %s176, 128, 128, 8
        $region20: #{tpu_custom_call.1} parent=15 // pred_fallthru
          _
        // Predicated region
        $region21: #{tpu_custom_call.1} parent=15 // pred_check
          %p199 = pneg %p91
        $region22: #{tpu_custom_call.1} parent=15 // pred_check_branch
          %201 = sbr.rel (%p199) target = $region24
        $region23: #{tpu_custom_call.1} parent=15 // pred_region
          %s202 = sand.u32 %s81, 1
          %s203 = scalar_lea.sflag [#allocation7], %s202
          %s204 = sand.u32 %s81, 1
          %s205 = smul.addr %s204, 64
          %s206 = scalar_lea.vmem [#allocation6], %s205
          %s207 = smul.u32 4, %s26
          %s208 = smul.u32 2, %s27
          %210 = vsyncadd %s203, 0
          %s211 = smul.addr %s207, 2
          %s212 = sadd.s32 %s208, %s211
          %s213 = smul.addr %s25, 8
          %s214 = sadd.s32 %s212, %s213
          %s215 = smul.addr %s214, 8
          %s216 = scalar_lea.hbm %s1, %s215
          %s217 = sshll.u32 %s216, 4
          %s218 = int_to_ptr.hbm [resolvable:$true] %s217
          %s219 = sshll.u32 %s206, 4
          %s220 = int_to_ptr.vmem [resolvable:$true] %s219
          %225 = dma.hbm_to_vmem [thread:$0]  %s218, 1024, %s220, %s203, 128, 128, 8
        $region24: #{tpu_custom_call.1} parent=15 // pred_fallthru
          _
        // Predicated region
        $region25: #{tpu_custom_call.1} parent=15 // pred_check
          %p226 = pneg %p119
        $region26: #{tpu_custom_call.1} parent=15 // pred_check_branch
          %228 = sbr.rel (%p226) target = $region28
        $region27: #{tpu_custom_call.1} parent=15 // pred_region
          %s229 = smul.u32 2, %s27
          %p230 = scmp.lt.s32.totalorder %s25, 1
          %s231 = scalar_select %p230, %s25, 1
          %p232 = scmp.lt.s32.totalorder %s229, 1
          %s233 = scalar_select %p232, %s229, 1
          %s234 = smul.addr %s231, 2
          %s235 = sadd.s32 %s233, %s234
          %s236 = smul.addr %s235, 8
          %s237 = scalar_lea.vmem %s2, %s236
          %s238 = smul.u32 2, %s27
        $region28: #{tpu_custom_call.1} parent=15 // pred_fallthru
          _
      $region16: #{tpu_custom_call.1} parent=5 // pred_fallthru
        _
      %p239 = scmp.le.s32.totalorder 1, %s18
      %p240 = scmp.lt.s32.totalorder %s18, 3
      %p241 = pnand %p239, %p240
      %p242 = pneg %p241
      // Predicated region
      $region29: #{tpu_custom_call.1} parent=5 // pred_check
        _
      $region30: #{tpu_custom_call.1} parent=5 // pred_check_branch
        %244 = sbr.rel (%p241) target = $region32
      $region31: #{tpu_custom_call.1} parent=5 // pred_region
        %s245 = ssub.s32 %s18, 1
        %s246 = sand.u32 %s54, 1
        %s247 = scalar_lea.sflag [#allocation4], %s246
        %s248 = sand.u32 %s54, 1
        %s249 = smul.addr %s248, 64
        %s250 = scalar_lea.vmem [#allocation3], %s249
        // Predicated region
        $region33: #{tpu_custom_call.1} parent=31 // pred_check
          %p251 = pneg %p67
        $region34: #{tpu_custom_call.1} parent=31 // pred_check_branch
          %253 = sbr.rel (%p251) target = $region36
        $region35: #{tpu_custom_call.1} parent=31 // pred_region
          %255 = dma.done %s247, 1024
        $region36: #{tpu_custom_call.1} parent=31 // pred_fallthru
          _
        %s256 = sand.u32 %s84, 1
        %s257 = scalar_lea.sflag [#allocation7], %s256
        %s258 = sand.u32 %s84, 1
        %s259 = smul.addr %s258, 64
        %s260 = scalar_lea.vmem [#allocation6], %s259
        // Predicated region
        $region37: #{tpu_custom_call.1} parent=31 // pred_check
          %p261 = pneg %p97
        $region38: #{tpu_custom_call.1} parent=31 // pred_check_branch
          %263 = sbr.rel (%p261) target = $region40
        $region39: #{tpu_custom_call.1} parent=31 // pred_region
          %265 = dma.done %s257, 1024
        $region40: #{tpu_custom_call.1} parent=31 // pred_fallthru
          _
        %s266 = sand.u32 %s54, 1
        %s267 = scalar_lea.sflag [#allocation4], %s266
        %s268 = sand.u32 %s54, 1
        %s269 = smul.addr %s268, 64
        %s270 = scalar_lea.vmem [#allocation3], %s269
        %p271 = pneg %p67
        %p272 = pneg %p64
        %s273 = sand.u32 %s84, 1
        %s274 = scalar_lea.sflag [#allocation7], %s273
        %s275 = sand.u32 %s84, 1
        %s276 = smul.addr %s275, 64
        %s277 = scalar_lea.vmem [#allocation6], %s276
        %p278 = pneg %p97
        %p279 = pneg %p94
        %s280 = smul.u32 2, %s30
        %p281 = scmp.lt.s32.totalorder %s28, 1
        %s282 = scalar_select %p281, %s28, 1
        %p283 = scmp.lt.s32.totalorder %s280, 1
        %s284 = scalar_select %p283, %s280, 1
        %s285 = smul.addr %s282, 2
        %s286 = sadd.s32 %s284, %s285
        %s287 = smul.addr %s286, 8
        %s288 = scalar_lea.vmem %s2, %s287
        %p289 = pneg %p125
        %p290 = pneg %p122
        %p291 = pneg %p153
        %p292 = pneg %p150
        %s293 = sand.u32 %s140, 1
        %s294 = scalar_lea.sflag [#allocation5], %s293
        %s295 = sand.u32 %s140, 1
        %s296 = smul.addr %s295, 128
        %s297 = scalar_lea.vmem [#allocation8], %s296
        %s298 = smul.u32 4, %s29
        %s299 = smul.u32 2, %s30
        %s300 = smul.u32 4, %s29
        %s301 = smul.u32 2, %s30
        %s302 = smul.u32 2, %s30
        %p303 = scmp.lt.s32.totalorder %s28, 1
        %s304 = scalar_select %p303, %s28, 1
        %p305 = scmp.lt.s32.totalorder %s302, 1
        %s306 = scalar_select %p305, %s302, 1
        %s307 = smul.addr %s304, 2
        %s308 = sadd.s32 %s306, %s307
        %s309 = smul.addr %s308, 8
        %s310 = scalar_lea.vmem %s2, %s309
        %s311 = smul.u32 2, %s30
        %s312 = smul.u32 4, %s29
        %p313 = scmp.eq.s32.totalorder %s30, 0
        // Predicated region
        $region41: #{tpu_custom_call.1} parent=31 // pred_check
          %p314 = pneg %p313
        $region42: #{tpu_custom_call.1} parent=31 // pred_check_branch
          %316 = sbr.rel (%p314) target = $region44
        $region43: #{tpu_custom_call.1} parent=31 // pred_region
          %vm317 = vcmask 261120
          %318 = vst.msk [vmem:[#allocation2] sm:$0xff] %vm317, 0.0
          %319 = vst.msk [vmem:[#allocation2 + $0x8] sm:$0xff] %vm317, 0.0
          %320 = vst.msk [vmem:[#allocation2 + $0x10] sm:$0xff] %vm317, 0.0
          %321 = vst.msk [vmem:[#allocation2 + $0x18] sm:$0xff] %vm317, 0.0
          %322 = vst.msk [vmem:[#allocation2 + $0x20] sm:$0xff] %vm317, 0.0
          %323 = vst.msk [vmem:[#allocation2 + $0x28] sm:$0xff] %vm317, 0.0
          %324 = vst.msk [vmem:[#allocation2 + $0x30] sm:$0xff] %vm317, 0.0
          %325 = vst.msk [vmem:[#allocation2 + $0x38] sm:$0xff] %vm317, 0.0
          %326 = vst.msk [vmem:[#allocation2 + $0x40] sm:$0xff] %vm317, 0.0
          %327 = vst.msk [vmem:[#allocation2 + $0x48] sm:$0xff] %vm317, 0.0
          %328 = vst.msk [vmem:[#allocation2 + $0x50] sm:$0xff] %vm317, 0.0
          %329 = vst.msk [vmem:[#allocation2 + $0x58] sm:$0xff] %vm317, 0.0
          %330 = vst.msk [vmem:[#allocation2 + $0x60] sm:$0xff] %vm317, 0.0
          %331 = vst.msk [vmem:[#allocation2 + $0x68] sm:$0xff] %vm317, 0.0
          %332 = vst.msk [vmem:[#allocation2 + $0x70] sm:$0xff] %vm317, 0.0
          %333 = vst.msk [vmem:[#allocation2 + $0x78] sm:$0xff] %vm317, 0.0
        $region44: #{tpu_custom_call.1} parent=31 // pred_fallthru
          _
        %v334 = vld [vmem:[%s250] sm:$0xff]
        %v335 = vld [vmem:[%s250 + $0x8] sm:$0xff]
        %v336 = vld [vmem:[%s250 + $0x10] sm:$0xff]
        %v337 = vld [vmem:[%s250 + $0x18] sm:$0xff]
        %v338 = vld [vmem:[%s250 + $0x20] sm:$0xff]
        %v339 = vld [vmem:[%s250 + $0x28] sm:$0xff]
        %v340 = vld [vmem:[%s250 + $0x30] sm:$0xff]
        %v341 = vld [vmem:[%s250 + $0x38] sm:$0xff]
        %v342 = vld [vmem:[%s260] sm:$0xff]
        %v343 = vld [vmem:[%s260 + $0x8] sm:$0xff]
        %v344 = vld [vmem:[%s260 + $0x10] sm:$0xff]
        %v345 = vld [vmem:[%s260 + $0x18] sm:$0xff]
        %v346 = vld [vmem:[%s260 + $0x20] sm:$0xff]
        %v347 = vld [vmem:[%s260 + $0x28] sm:$0xff]
        %v348 = vld [vmem:[%s260 + $0x30] sm:$0xff]
        %v349 = vld [vmem:[%s260 + $0x38] sm:$0xff]
        %v350 = vld [vmem:[%s310] sm:$0xff]
        %v351 = vld [vmem:[%s310 + $0x8] sm:$0xff]
        %vm352 = vcmp.gt.f32.partialorder %v334, 0.0
        %vm353 = vcmp.gt.f32.partialorder %v335, 0.0
        %vm354 = vcmp.gt.f32.partialorder %v336, 0.0
        %vm355 = vcmp.gt.f32.partialorder %v337, 0.0
        %vm356 = vcmp.gt.f32.partialorder %v338, 0.0
        %vm357 = vcmp.gt.f32.partialorder %v339, 0.0
        %vm358 = vcmp.gt.f32.partialorder %v340, 0.0
        %vm359 = vcmp.gt.f32.partialorder %v341, 0.0
        %v360 = vadd.f32 %v334, 1.0
        %v361 = vadd.f32 %v335, 1.0
        %v362 = vadd.f32 %v336, 1.0
        %v363 = vadd.f32 %v337, 1.0
        %v364 = vadd.f32 %v338, 1.0
        %v365 = vadd.f32 %v339, 1.0
        %v366 = vadd.f32 %v340, 1.0
        %v367 = vadd.f32 %v341, 1.0
        %v368 = vmul.f32 %v334, 1.442695
        %v369 = vpow.pop %v368
        %v370 = vmul.f32 %v335, 1.442695
        %v371 = vpow.pop %v370
        %v372 = vmul.f32 %v336, 1.442695
        %v373 = vpow.pop %v372
        %v374 = vmul.f32 %v337, 1.442695
        %v375 = vpow.pop %v374
        %v376 = vmul.f32 %v338, 1.442695
        %v377 = vpow.pop %v376
        %v378 = vmul.f32 %v339, 1.442695
        %v379 = vpow.pop %v378
        %v380 = vmul.f32 %v340, 1.442695
        %v381 = vpow.pop %v380
        %v382 = vmul.f32 %v341, 1.442695
        %v383 = vpow.pop %v382
        %v384 = vsel %vm352, %v360, %v369
        %v385 = vsel %vm353, %v361, %v371
        %v386 = vsel %vm354, %v362, %v373
        %v387 = vsel %vm355, %v363, %v375
        %v388 = vsel %vm356, %v364, %v377
        %v389 = vsel %vm357, %v365, %v379
        %v390 = vsel %vm358, %v366, %v381
        %v391 = vsel %vm359, %v367, %v383
        %393 = vset.pattern.permute.xlu0 0
        %394 = vperm.xlu0 %393, %v350
        %v395 = vpop.permute.xlu0 %394
        %398 = vset.pattern.permute.xlu0 0
        %399 = vperm.xlu0 %398, %v351
        %v400 = vpop.permute.xlu0 %399
        %v402 = vmul.f32 %v384, %v395
        %v403 = vmul.f32 %v385, %v400
        %v404 = vmul.f32 %v386, %v395
        %v405 = vmul.f32 %v387, %v400
        %v406 = vmul.f32 %v388, %v395
        %v407 = vmul.f32 %v389, %v400
        %v408 = vmul.f32 %v390, %v395
        %v409 = vmul.f32 %v391, %v400
        %v410 = vmul.f32 %v342, %v395
        %v411 = vmul.f32 %v343, %v400
        %v412 = vmul.f32 %v344, %v395
        %v413 = vmul.f32 %v345, %v400
        %v414 = vmul.f32 %v346, %v395
        %v415 = vmul.f32 %v347, %v400
        %v416 = vmul.f32 %v348, %v395
        %v417 = vmul.f32 %v349, %v400
        %v418 = vld [vmem:[#allocation2] sm:$0xff]
        %v419 = vld [vmem:[#allocation2 + $0x8] sm:$0xff]
        %v420 = vld [vmem:[#allocation2 + $0x10] sm:$0xff]
        %v421 = vld [vmem:[#allocation2 + $0x18] sm:$0xff]
        %v422 = vld [vmem:[#allocation2 + $0x20] sm:$0xff]
        %v423 = vld [vmem:[#allocation2 + $0x28] sm:$0xff]
        %v424 = vld [vmem:[#allocation2 + $0x30] sm:$0xff]
        %v425 = vld [vmem:[#allocation2 + $0x38] sm:$0xff]
        %v426 = vld [vmem:[#allocation2 + $0x40] sm:$0xff]
        %v427 = vld [vmem:[#allocation2 + $0x48] sm:$0xff]
        %v428 = vld [vmem:[#allocation2 + $0x50] sm:$0xff]
        %v429 = vld [vmem:[#allocation2 + $0x58] sm:$0xff]
        %v430 = vld [vmem:[#allocation2 + $0x60] sm:$0xff]
        %v431 = vld [vmem:[#allocation2 + $0x68] sm:$0xff]
        %v432 = vld [vmem:[#allocation2 + $0x70] sm:$0xff]
        %v433 = vld [vmem:[#allocation2 + $0x78] sm:$0xff]
        %434 = vxpose.xlu0.b32.start [1/16] %v402, 128
        %435 = vxpose.xlu0.b32.cont [2/16] %v403, 128
        %436 = vxpose.xlu0.b32.cont [3/16] 0.0, 128
        %437 = vxpose.xlu0.b32.cont [4/16] 0.0, 128
        %438 = vxpose.xlu0.b32.cont [5/16] 0.0, 128
        %439 = vxpose.xlu0.b32.cont [6/16] 0.0, 128
        %440 = vxpose.xlu0.b32.cont [7/16] 0.0, 128
        %441 = vxpose.xlu0.b32.cont [8/16] 0.0, 128
        %442 = vxpose.xlu0.b32.cont [9/16] 0.0, 128
        %443 = vxpose.xlu0.b32.cont [10/16] 0.0, 128
        %444 = vxpose.xlu0.b32.cont [11/16] 0.0, 128
        %445 = vxpose.xlu0.b32.cont [12/16] 0.0, 128
        %446 = vxpose.xlu0.b32.cont [13/16] 0.0, 128
        %447 = vxpose.xlu0.b32.cont [14/16] 0.0, 128
        %448 = vxpose.xlu0.b32.cont [15/16] 0.0, 128
        %449 = vxpose.xlu0.b32.end [16/16] 0.0, 128
        %v450 = vpop.trf.xlu0
        %v451 = vpop.trf.xlu0
        %v452 = vpop.trf.xlu0
        %v453 = vpop.trf.xlu0
        %v454 = vpop.trf.xlu0
        %v455 = vpop.trf.xlu0
        %v456 = vpop.trf.xlu0
        %v457 = vpop.trf.xlu0
        %v458 = vpop.trf.xlu0
        %v459 = vpop.trf.xlu0
        %v460 = vpop.trf.xlu0
        %v461 = vpop.trf.xlu0
        %v462 = vpop.trf.xlu0
        %v463 = vpop.trf.xlu0
        %v464 = vpop.trf.xlu0
        %v465 = vpop.trf.xlu0
        %vm466 = vcmask 130048
        %v468 = vsel %vm466, %v450, 0
        %v471 = vsel %vm466, %v451, 0
        %v474 = vsel %vm466, %v452, 0
        %v477 = vsel %vm466, %v453, 0
        %479 = vmatpush.msra.mxu0 0.0
        %480 = vmatpush.msra.mxu0 0.0
        %481 = vmatpush.msra.mxu0 0.0
        %482 = vmatpush.msra.mxu0 0.0
        %483 = vmatpush.msra.mxu0 0.0
        %484 = vmatpush.msra.mxu0 0.0
        %485 = vmatpush.msra.mxu0 0.0
        %486 = vmatpush.msra.mxu0 0.0
        %487 = vmatpush.msra.mxu0 0.0
        %488 = vmatpush.msra.mxu0 0.0
        %489 = vmatpush.msra.mxu0 0.0
        %490 = vmatpush.msra.mxu0 0.0
        %491 = vmatpush.msra.mxu0 0.0
        %492 = vmatpush.msra.mxu0 0.0
        %493 = vmatpush.msra.mxu0 %v411
        %494 = vmatpush.msra.mxu0 %v410
        %495 = vmatmul.f32.gmra.mxu0 %v468
        %v496 = vpop.f32.mrf.mxu0
        %v497 = vadd.f32 0.0, %v496
        %498 = vmatmul.f32.gmra.mxu0 %v471
        %v499 = vpop.f32.mrf.mxu0
        %v500 = vadd.f32 0.0, %v499
        %501 = vmatmul.f32.gmra.mxu0 %v474
        %v502 = vpop.f32.mrf.mxu0
        %v503 = vadd.f32 0.0, %v502
        %504 = vmatmul.f32.gmra.mxu0 %v477
        %v505 = vpop.f32.mrf.mxu0
        %v506 = vadd.f32 0.0, %v505
        %507 = vdwg.mxu0
        %508 = vxpose.xlu0.b32.start [1/16] %v404, 128
        %509 = vxpose.xlu0.b32.cont [2/16] %v405, 128
        %510 = vxpose.xlu0.b32.cont [3/16] 0.0, 128
        %511 = vxpose.xlu0.b32.cont [4/16] 0.0, 128
        %512 = vxpose.xlu0.b32.cont [5/16] 0.0, 128
        %513 = vxpose.xlu0.b32.cont [6/16] 0.0, 128
        %514 = vxpose.xlu0.b32.cont [7/16] 0.0, 128
        %515 = vxpose.xlu0.b32.cont [8/16] 0.0, 128
        %516 = vxpose.xlu0.b32.cont [9/16] 0.0, 128
        %517 = vxpose.xlu0.b32.cont [10/16] 0.0, 128
        %518 = vxpose.xlu0.b32.cont [11/16] 0.0, 128
        %519 = vxpose.xlu0.b32.cont [12/16] 0.0, 128
        %520 = vxpose.xlu0.b32.cont [13/16] 0.0, 128
        %521 = vxpose.xlu0.b32.cont [14/16] 0.0, 128
        %522 = vxpose.xlu0.b32.cont [15/16] 0.0, 128
        %523 = vxpose.xlu0.b32.end [16/16] 0.0, 128
        %v524 = vpop.trf.xlu0
        %v525 = vpop.trf.xlu0
        %v526 = vpop.trf.xlu0
        %v527 = vpop.trf.xlu0
        %v528 = vpop.trf.xlu0
        %v529 = vpop.trf.xlu0
        %v530 = vpop.trf.xlu0
        %v531 = vpop.trf.xlu0
        %v532 = vpop.trf.xlu0
        %v533 = vpop.trf.xlu0
        %v534 = vpop.trf.xlu0
        %v535 = vpop.trf.xlu0
        %v536 = vpop.trf.xlu0
        %v537 = vpop.trf.xlu0
        %v538 = vpop.trf.xlu0
        %v539 = vpop.trf.xlu0
        %v541 = vsel %vm466, %v524, 0
        %v544 = vsel %vm466, %v525, 0
        %v547 = vsel %vm466, %v526, 0
        %v550 = vsel %vm466, %v527, 0
        %552 = vmatpush.msra.mxu0 0.0
        %553 = vmatpush.msra.mxu0 0.0
        %554 = vmatpush.msra.mxu0 0.0
        %555 = vmatpush.msra.mxu0 0.0
        %556 = vmatpush.msra.mxu0 0.0
        %557 = vmatpush.msra.mxu0 0.0
        %558 = vmatpush.msra.mxu0 0.0
        %559 = vmatpush.msra.mxu0 0.0
        %560 = vmatpush.msra.mxu0 0.0
        %561 = vmatpush.msra.mxu0 0.0
        %562 = vmatpush.msra.mxu0 0.0
        %563 = vmatpush.msra.mxu0 0.0
        %564 = vmatpush.msra.mxu0 0.0
        %565 = vmatpush.msra.mxu0 0.0
        %566 = vmatpush.msra.mxu0 %v413
        %567 = vmatpush.msra.mxu0 %v412
        %568 = vmatmul.f32.gmra.mxu0 %v541
        %v569 = vpop.f32.mrf.mxu0
        %v570 = vadd.f32 0.0, %v569
        %571 = vmatmul.f32.gmra.mxu0 %v544
        %v572 = vpop.f32.mrf.mxu0
        %v573 = vadd.f32 0.0, %v572
        %574 = vmatmul.f32.gmra.mxu0 %v547
        %v575 = vpop.f32.mrf.mxu0
        %v576 = vadd.f32 0.0, %v575
        %577 = vmatmul.f32.gmra.mxu0 %v550
        %v578 = vpop.f32.mrf.mxu0
        %v579 = vadd.f32 0.0, %v578
        %580 = vdwg.mxu0
        %581 = vxpose.xlu0.b32.start [1/16] %v406, 128
        %582 = vxpose.xlu0.b32.cont [2/16] %v407, 128
        %583 = vxpose.xlu0.b32.cont [3/16] 0.0, 128
        %584 = vxpose.xlu0.b32.cont [4/16] 0.0, 128
        %585 = vxpose.xlu0.b32.cont [5/16] 0.0, 128
        %586 = vxpose.xlu0.b32.cont [6/16] 0.0, 128
        %587 = vxpose.xlu0.b32.cont [7/16] 0.0, 128
        %588 = vxpose.xlu0.b32.cont [8/16] 0.0, 128
        %589 = vxpose.xlu0.b32.cont [9/16] 0.0, 128
        %590 = vxpose.xlu0.b32.cont [10/16] 0.0, 128
        %591 = vxpose.xlu0.b32.cont [11/16] 0.0, 128
        %592 = vxpose.xlu0.b32.cont [12/16] 0.0, 128
        %593 = vxpose.xlu0.b32.cont [13/16] 0.0, 128
        %594 = vxpose.xlu0.b32.cont [14/16] 0.0, 128
        %595 = vxpose.xlu0.b32.cont [15/16] 0.0, 128
        %596 = vxpose.xlu0.b32.end [16/16] 0.0, 128
        %v597 = vpop.trf.xlu0
        %v598 = vpop.trf.xlu0
        %v599 = vpop.trf.xlu0
        %v600 = vpop.trf.xlu0
        %v601 = vpop.trf.xlu0
        %v602 = vpop.trf.xlu0
        %v603 = vpop.trf.xlu0
        %v604 = vpop.trf.xlu0
        %v605 = vpop.trf.xlu0
        %v606 = vpop.trf.xlu0
        %v607 = vpop.trf.xlu0
        %v608 = vpop.trf.xlu0
        %v609 = vpop.trf.xlu0
        %v610 = vpop.trf.xlu0
        %v611 = vpop.trf.xlu0
        %v612 = vpop.trf.xlu0
        %v614 = vsel %vm466, %v597, 0
        %v617 = vsel %vm466, %v598, 0
        %v620 = vsel %vm466, %v599, 0
        %v623 = vsel %vm466, %v600, 0
        %625 = vmatpush.msra.mxu0 0.0
        %626 = vmatpush.msra.mxu0 0.0
        %627 = vmatpush.msra.mxu0 0.0
        %628 = vmatpush.msra.mxu0 0.0
        %629 = vmatpush.msra.mxu0 0.0
        %630 = vmatpush.msra.mxu0 0.0
        %631 = vmatpush.msra.mxu0 0.0
        %632 = vmatpush.msra.mxu0 0.0
        %633 = vmatpush.msra.mxu0 0.0
        %634 = vmatpush.msra.mxu0 0.0
        %635 = vmatpush.msra.mxu0 0.0
        %636 = vmatpush.msra.mxu0 0.0
        %637 = vmatpush.msra.mxu0 0.0
        %638 = vmatpush.msra.mxu0 0.0
        %639 = vmatpush.msra.mxu0 %v415
        %640 = vmatpush.msra.mxu0 %v414
        %641 = vmatmul.f32.gmra.mxu0 %v614
        %v642 = vpop.f32.mrf.mxu0
        %v643 = vadd.f32 0.0, %v642
        %644 = vmatmul.f32.gmra.mxu0 %v617
        %v645 = vpop.f32.mrf.mxu0
        %v646 = vadd.f32 0.0, %v645
        %647 = vmatmul.f32.gmra.mxu0 %v620
        %v648 = vpop.f32.mrf.mxu0
        %v649 = vadd.f32 0.0, %v648
        %650 = vmatmul.f32.gmra.mxu0 %v623
        %v651 = vpop.f32.mrf.mxu0
        %v652 = vadd.f32 0.0, %v651
        %653 = vdwg.mxu0
        %654 = vxpose.xlu0.b32.start [1/16] %v408, 128
        %655 = vxpose.xlu0.b32.cont [2/16] %v409, 128
        %656 = vxpose.xlu0.b32.cont [3/16] 0.0, 128
        %657 = vxpose.xlu0.b32.cont [4/16] 0.0, 128
        %658 = vxpose.xlu0.b32.cont [5/16] 0.0, 128
        %659 = vxpose.xlu0.b32.cont [6/16] 0.0, 128
        %660 = vxpose.xlu0.b32.cont [7/16] 0.0, 128
        %661 = vxpose.xlu0.b32.cont [8/16] 0.0, 128
        %662 = vxpose.xlu0.b32.cont [9/16] 0.0, 128
        %663 = vxpose.xlu0.b32.cont [10/16] 0.0, 128
        %664 = vxpose.xlu0.b32.cont [11/16] 0.0, 128
        %665 = vxpose.xlu0.b32.cont [12/16] 0.0, 128
        %666 = vxpose.xlu0.b32.cont [13/16] 0.0, 128
        %667 = vxpose.xlu0.b32.cont [14/16] 0.0, 128
        %668 = vxpose.xlu0.b32.cont [15/16] 0.0, 128
        %669 = vxpose.xlu0.b32.end [16/16] 0.0, 128
        %v670 = vpop.trf.xlu0
        %v671 = vpop.trf.xlu0
        %v672 = vpop.trf.xlu0
        %v673 = vpop.trf.xlu0
        %v674 = vpop.trf.xlu0
        %v675 = vpop.trf.xlu0
        %v676 = vpop.trf.xlu0
        %v677 = vpop.trf.xlu0
        %v678 = vpop.trf.xlu0
        %v679 = vpop.trf.xlu0
        %v680 = vpop.trf.xlu0
        %v681 = vpop.trf.xlu0
        %v682 = vpop.trf.xlu0
        %v683 = vpop.trf.xlu0
        %v684 = vpop.trf.xlu0
        %v685 = vpop.trf.xlu0
        %v687 = vsel %vm466, %v670, 0
        %v690 = vsel %vm466, %v671, 0
        %v693 = vsel %vm466, %v672, 0
        %v696 = vsel %vm466, %v673, 0
        %698 = vmatpush.msra.mxu0 0.0
        %699 = vmatpush.msra.mxu0 0.0
        %700 = vmatpush.msra.mxu0 0.0
        %701 = vmatpush.msra.mxu0 0.0
        %702 = vmatpush.msra.mxu0 0.0
        %703 = vmatpush.msra.mxu0 0.0
        %704 = vmatpush.msra.mxu0 0.0
        %705 = vmatpush.msra.mxu0 0.0
        %706 = vmatpush.msra.mxu0 0.0
        %707 = vmatpush.msra.mxu0 0.0
        %708 = vmatpush.msra.mxu0 0.0
        %709 = vmatpush.msra.mxu0 0.0
        %710 = vmatpush.msra.mxu0 0.0
        %711 = vmatpush.msra.mxu0 0.0
        %712 = vmatpush.msra.mxu0 %v417
        %713 = vmatpush.msra.mxu0 %v416
        %714 = vmatmul.f32.gmra.mxu0 %v687
        %v715 = vpop.f32.mrf.mxu0
        %v716 = vadd.f32 0.0, %v715
        %717 = vmatmul.f32.gmra.mxu0 %v690
        %v718 = vpop.f32.mrf.mxu0
        %v719 = vadd.f32 0.0, %v718
        %720 = vmatmul.f32.gmra.mxu0 %v693
        %v721 = vpop.f32.mrf.mxu0
        %v722 = vadd.f32 0.0, %v721
        %723 = vmatmul.f32.gmra.mxu0 %v696
        %v724 = vpop.f32.mrf.mxu0
        %v725 = vadd.f32 0.0, %v724
        %726 = vdwg.mxu0
        %v727 = vadd.f32 %v418, %v497
        %v728 = vadd.f32 %v419, %v500
        %v729 = vadd.f32 %v420, %v503
        %v730 = vadd.f32 %v421, %v506
        %v731 = vadd.f32 %v422, %v570
        %v732 = vadd.f32 %v423, %v573
        %v733 = vadd.f32 %v424, %v576
        %v734 = vadd.f32 %v425, %v579
        %v735 = vadd.f32 %v426, %v643
        %v736 = vadd.f32 %v427, %v646
        %v737 = vadd.f32 %v428, %v649
        %v738 = vadd.f32 %v429, %v652
        %v739 = vadd.f32 %v430, %v716
        %v740 = vadd.f32 %v431, %v719
        %v741 = vadd.f32 %v432, %v722
        %v742 = vadd.f32 %v433, %v725
        %vm743 = vcmask 261120
        %744 = vst.msk [vmem:[#allocation2] sm:$0xff] %vm743, %v727
        %745 = vst.msk [vmem:[#allocation2 + $0x8] sm:$0xff] %vm743, %v728
        %746 = vst.msk [vmem:[#allocation2 + $0x10] sm:$0xff] %vm743, %v729
        %747 = vst.msk [vmem:[#allocation2 + $0x18] sm:$0xff] %vm743, %v730
        %748 = vst.msk [vmem:[#allocation2 + $0x20] sm:$0xff] %vm743, %v731
        %749 = vst.msk [vmem:[#allocation2 + $0x28] sm:$0xff] %vm743, %v732
        %750 = vst.msk [vmem:[#allocation2 + $0x30] sm:$0xff] %vm743, %v733
        %751 = vst.msk [vmem:[#allocation2 + $0x38] sm:$0xff] %vm743, %v734
        %752 = vst.msk [vmem:[#allocation2 + $0x40] sm:$0xff] %vm743, %v735
        %753 = vst.msk [vmem:[#allocation2 + $0x48] sm:$0xff] %vm743, %v736
        %754 = vst.msk [vmem:[#allocation2 + $0x50] sm:$0xff] %vm743, %v737
        %755 = vst.msk [vmem:[#allocation2 + $0x58] sm:$0xff] %vm743, %v738
        %756 = vst.msk [vmem:[#allocation2 + $0x60] sm:$0xff] %vm743, %v739
        %757 = vst.msk [vmem:[#allocation2 + $0x68] sm:$0xff] %vm743, %v740
        %758 = vst.msk [vmem:[#allocation2 + $0x70] sm:$0xff] %vm743, %v741
        %759 = vst.msk [vmem:[#allocation2 + $0x78] sm:$0xff] %vm743, %v742
        // Predicated region
        $region45: #{tpu_custom_call.1} parent=31 // pred_check
          %p760 = pneg %p313
        $region46: #{tpu_custom_call.1} parent=31 // pred_check_branch
          %762 = sbr.rel (%p760) target = $region48
        $region47: #{tpu_custom_call.1} parent=31 // pred_region
          %v763 = vld [vmem:[#allocation2] sm:$0xff]
          %v764 = vld [vmem:[#allocation2 + $0x8] sm:$0xff]
          %v765 = vld [vmem:[#allocation2 + $0x10] sm:$0xff]
          %v766 = vld [vmem:[#allocation2 + $0x18] sm:$0xff]
          %v767 = vld [vmem:[#allocation2 + $0x20] sm:$0xff]
          %v768 = vld [vmem:[#allocation2 + $0x28] sm:$0xff]
          %v769 = vld [vmem:[#allocation2 + $0x30] sm:$0xff]
          %v770 = vld [vmem:[#allocation2 + $0x38] sm:$0xff]
          %v771 = vld [vmem:[#allocation2 + $0x40] sm:$0xff]
          %v772 = vld [vmem:[#allocation2 + $0x48] sm:$0xff]
          %v773 = vld [vmem:[#allocation2 + $0x50] sm:$0xff]
          %v774 = vld [vmem:[#allocation2 + $0x58] sm:$0xff]
          %v775 = vld [vmem:[#allocation2 + $0x60] sm:$0xff]
          %v776 = vld [vmem:[#allocation2 + $0x68] sm:$0xff]
          %v777 = vld [vmem:[#allocation2 + $0x70] sm:$0xff]
          %v778 = vld [vmem:[#allocation2 + $0x78] sm:$0xff]
          %v779 = vmul.f32 %v763, 0.25
          %v780 = vmul.f32 %v764, 0.25
          %v781 = vmul.f32 %v765, 0.25
          %v782 = vmul.f32 %v766, 0.25
          %v783 = vmul.f32 %v767, 0.25
          %v784 = vmul.f32 %v768, 0.25
          %v785 = vmul.f32 %v769, 0.25
          %v786 = vmul.f32 %v770, 0.25
          %v787 = vmul.f32 %v771, 0.25
          %v788 = vmul.f32 %v772, 0.25
          %v789 = vmul.f32 %v773, 0.25
          %v790 = vmul.f32 %v774, 0.25
          %v791 = vmul.f32 %v775, 0.25
          %v792 = vmul.f32 %v776, 0.25
          %v793 = vmul.f32 %v777, 0.25
          %v794 = vmul.f32 %v778, 0.25
          %795 = vst.msk [vmem:[%s297] sm:$0xff] %vm743, %v779
          %796 = vst.msk [vmem:[%s297 + $0x8] sm:$0xff] %vm743, %v780
          %797 = vst.msk [vmem:[%s297 + $0x10] sm:$0xff] %vm743, %v781
          %798 = vst.msk [vmem:[%s297 + $0x18] sm:$0xff] %vm743, %v782
          %799 = vst.msk [vmem:[%s297 + $0x20] sm:$0xff] %vm743, %v783
          %800 = vst.msk [vmem:[%s297 + $0x28] sm:$0xff] %vm743, %v784
          %801 = vst.msk [vmem:[%s297 + $0x30] sm:$0xff] %vm743, %v785
          %802 = vst.msk [vmem:[%s297 + $0x38] sm:$0xff] %vm743, %v786
          %803 = vst.msk [vmem:[%s297 + $0x40] sm:$0xff] %vm743, %v787
          %804 = vst.msk [vmem:[%s297 + $0x48] sm:$0xff] %vm743, %v788
          %805 = vst.msk [vmem:[%s297 + $0x50] sm:$0xff] %vm743, %v789
          %806 = vst.msk [vmem:[%s297 + $0x58] sm:$0xff] %vm743, %v790
          %807 = vst.msk [vmem:[%s297 + $0x60] sm:$0xff] %vm743, %v791
          %808 = vst.msk [vmem:[%s297 + $0x68] sm:$0xff] %vm743, %v792
          %809 = vst.msk [vmem:[%s297 + $0x70] sm:$0xff] %vm743, %v793
          %810 = vst.msk [vmem:[%s297 + $0x78] sm:$0xff] %vm743, %v794
        $region48: #{tpu_custom_call.1} parent=31 // pred_fallthru
          _
        %s811 = sand.u32 %s140, 1
        %s812 = scalar_lea.sflag [#allocation5], %s811
        %s813 = sand.u32 %s140, 1
        %s814 = smul.addr %s813, 128
        %s815 = scalar_lea.vmem [#allocation8], %s814
        // Predicated region
        $region49: #{tpu_custom_call.1} parent=31 // pred_check
          %p816 = pneg %p150
        $region50: #{tpu_custom_call.1} parent=31 // pred_check_branch
          %818 = sbr.rel (%p816) target = $region52
        $region51: #{tpu_custom_call.1} parent=31 // pred_region
          %s819 = smul.u32 4, %s29
          %821 = vsyncadd %s812, 0
          %s822 = smul.addr %s819, 4
          %s823 = smul.addr %s28, 16
          %s824 = sadd.s32 %s822, %s823
          %s825 = smul.addr %s824, 8
          %s826 = scalar_lea.hbm %s3, %s825
          %s827 = sshll.u32 %s815, 4
          %s828 = int_to_ptr.vmem [resolvable:$true] %s827
          %s829 = sshll.u32 %s826, 4
          %s830 = int_to_ptr.hbm [resolvable:$true] %s829
          %835 = dma.vmem_to_hbm [thread:$0]  %s828, 2048, %s830, %s812, 128, 128, 8
        $region52: #{tpu_custom_call.1} parent=31 // pred_fallthru
          _
      $region32: #{tpu_custom_call.1} parent=5 // pred_fallthru
        _
      %p836 = scmp.le.s32.totalorder 2, %s18
      // Predicated region
      $region53: #{tpu_custom_call.1} parent=5 // pred_check
        %p837 = pneg %p836
      $region54: #{tpu_custom_call.1} parent=5 // pred_check_branch
        %839 = sbr.rel (%p837) target = $region56
      $region55: #{tpu_custom_call.1} parent=5 // pred_region
        %s840 = ssub.s32 %s18, 2
        // Predicated region
        $region57: #{tpu_custom_call.1} parent=55 // pred_check
          %p841 = pneg %p156
        $region58: #{tpu_custom_call.1} parent=55 // pred_check_branch
          %843 = sbr.rel (%p841) target = $region60
        $region59: #{tpu_custom_call.1} parent=55 // pred_region
          %s844 = sand.u32 %s141, 1
          %s845 = scalar_lea.sflag [#allocation5], %s844
          %s846 = sand.u32 %s141, 1
          %s847 = smul.addr %s846, 128
          %s848 = scalar_lea.vmem [#allocation8], %s847
          %850 = dma.done %s845, 2048
        $region60: #{tpu_custom_call.1} parent=55 // pred_fallthru
          _
      $region56: #{tpu_custom_call.1} parent=5 // pred_fallthru
        _
    $region6: #{tpu_custom_call.1} parent=1 // loop_footer
      %s22 = sadd.s32 1, %s18
    $region7: #{tpu_custom_call.1} parent=1 // loop_footer_branch
      %17 = sbr.rel target = $region3
    $region8: #{tpu_custom_call.1} parent=1 // loop_exit
      _
    %851 = vsyncpa [#allocation4], 1
    %s852 = scalar_lea.sflag [#allocation4], 1
    %853 = vsyncpa %s852, 1
    %854 = vsyncpa [#allocation7], 1
    %s855 = scalar_lea.sflag [#allocation7], 1
    %856 = vsyncpa %s855, 1
    %857 = vsyncpa [#allocation5], 1
    %s858 = scalar_lea.sflag [#allocation5], 1
    %859 = vsyncpa %s858, 1

</llo_original>
